<compile_context>
chip_gen: v6e
topology: v6e:2x2x1
jax: 0.10.0
libtpu: 0.0.40
codegen_flags: <defaults>
</compile_context>

<pallas_src>
import functools

import numpy as np
import jax
import jax.numpy as jnp
from jax.experimental import pallas as pl
from jax.experimental.pallas import tpu as pltpu

GRID_NUNQ = 384          # HorizontalEncoding.grid_nunq
BN_EPS = 1e-5


# --------------------------------------------------------------------------
# Generation-aware VMEM limits & tiling
# --------------------------------------------------------------------------
def _vmem_params():
    """Returns (vmem_limit_bytes, per-x-tile budget in bytes)."""
    cap = 64 * 1024 * 1024                      # conservative default (v7x per-TC)
    try:
        info = pltpu.get_tpu_info()
        cap = int(getattr(info, "vmem_capacity_bytes", cap)) or cap
    except Exception:
        pass
    if cap >= 128 * 1024 * 1024:                # v5e / v6e: 128 MiB physical VMEM
        return 96 * 1024 * 1024, 8 * 1024 * 1024
    # v7x: 64 MiB per TensorCore.  Pass 2 holds ~4x the x-tile (in + out,
    # each double-buffered) plus the small broadcast operands.
    return min(48 * 1024 * 1024, (cap * 3) // 4), 4 * 1024 * 1024


def _largest_divisor_at_most(n, cap):
    cap = max(1, min(n, cap))
    for d in range(cap, 0, -1):
        if n % d == 0:
            return d
    return 1


def _choose_tiles(B, L, H, elem_bytes, budget):
    """Pick (b_tile, l_tile).

    l_tile must divide L and be a multiple of 8 (or L itself) because it sits
    on the second-to-last dim of the x block.  b_tile may be ANY divisor of B
    (third-from-last dim; pe/emb broadcast operands carry their own singleton
    dims), so there is no silent fall-through to b_tile=B when nothing fits.
    """
    l_cands = sorted({c for c in (2048, 1024, 512, 256, 128, 64, 32, 16, 8)
                      if L % c == 0} | {L}, reverse=True)
    l_tile = l_cands[-1]
    for c in l_cands:
        if c * H * elem_bytes <= budget:
            l_tile = c
            break
    per_row = max(1, l_tile * H * elem_bytes)
    b_tile = _largest_divisor_at_most(B, max(1, budget // per_row))
    return b_tile, l_tile


# --------------------------------------------------------------------------
# Kernels
# --------------------------------------------------------------------------
def _fused_kernel(x_ref, pe_ref, emb_ref, gamma_ref, beta_ref, o_ref):
    """Single-kernel fast path: whole tensor resident in VMEM.

    x_ref (B,L,H), pe_ref (1,L,H), emb_ref (B,1,H), gamma/beta (1,1,H).
    Uses centered (two-sweep-in-vregs) variance for best numerics.
    """
    y = x_ref[...].astype(jnp.float32) + pe_ref[...] + emb_ref[...]
    inv_count = 1.0 / (y.shape[0] * y.shape[1])
    mean = jnp.sum(y, axis=(0, 1), keepdims=True) * inv_count
    yc = y - mean
    var = jnp.sum(yc * yc, axis=(0, 1), keepdims=True) * inv_count
    scale = gamma_ref[...] * jax.lax.rsqrt(var + BN_EPS)
    o_ref[...] = (yc * scale + beta_ref[...]).astype(o_ref.dtype)


def _stats_kernel(x_ref, pe_ref, emb_ref, stats_ref):
    """Pass 1: per-channel [sum, sum_sq] of y_c = x + pe_c + emb_c.

    x_ref     : VMEM (Bt, Lt, H)
    pe_ref    : VMEM (1, Lt, H)    -- mean-centered positional encoding tile
    emb_ref   : VMEM (Bt, 1, H)    -- mean-centered gathered embedding tile
    stats_ref : VMEM (1, 2, H) f32 -- per-bi partial accumulator, resident
                                      across the li ("arbitrary") grid axis.
    """
    @pl.when(pl.program_id(1) == 0)
    def _():
        stats_ref[...] = jnp.zeros_like(stats_ref)

    y = x_ref[...].astype(jnp.float32) + pe_ref[...] + emb_ref[...]
    # Two separate row accumulations (no per-tile stack/concat shuffle).
    stats_ref[:, 0:1, :] += jnp.sum(y, axis=(0, 1), keepdims=True)
    stats_ref[:, 1:2, :] += jnp.sum(y * y, axis=(0, 1), keepdims=True)


def _norm_kernel(x_ref, pe_s_ref, emb_s_ref, scale_ref, o_ref):
    """Pass 2: out = x*scale + pe_s + emb_s  (BN epilogue folded into pe/emb)."""
    out = (x_ref[...].astype(jnp.float32) * scale_ref[...]
           + pe_s_ref[...] + emb_s_ref[...])
    o_ref[...] = out.astype(o_ref.dtype)


# --------------------------------------------------------------------------
# Jitted drivers
# --------------------------------------------------------------------------
@functools.partial(jax.jit, static_argnames=("vmem_limit",))
def _vh_fused(x, g_id, pe_full, emb_table, gamma, beta, *, vmem_limit):
    B, L, H = x.shape
    pe = pe_full[:L].astype(jnp.float32).reshape(1, L, H)
    emb = emb_table[g_id].astype(jnp.float32).reshape(B, 1, H)   # XLA gather
    gamma3 = gamma.astype(jnp.float32).reshape(1, 1, H)
    beta3 = beta.astype(jnp.float32).reshape(1, 1, H)
    return pl.pallas_call(
        _fused_kernel,
        out_shape=jax.ShapeDtypeStruct((B, L, H), x.dtype),
        compiler_params=pltpu.CompilerParams(vmem_limit_bytes=vmem_limit),
    )(x, pe, emb, gamma3, beta3)


@functools.partial(jax.jit, static_argnames=("b_tile", "l_tile", "vmem_limit"))
def _vh_two_pass(x, g_id, pe_full, emb_table, gamma, beta,
                 *, b_tile, l_tile, vmem_limit):
    B, L, H = x.shape
    pe = pe_full[:L].astype(jnp.float32)                 # (L, H)
    emb = emb_table[g_id].astype(jnp.float32)            # (B, H) gather by XLA
    # Per-channel pivot: remove pe/emb means before accumulating squares so
    # the single-sweep variance does not cancel catastrophically.
    pe_c = (pe - pe.mean(axis=0, keepdims=True)).reshape(1, L, H)
    emb_c = (emb - emb.mean(axis=0, keepdims=True)).reshape(B, 1, H)

    grid = (B // b_tile, L // l_tile)
    n_elem = B * L * H
    itemsize = x.dtype.itemsize

    x_spec = pl.BlockSpec((b_tile, l_tile, H), lambda bi, li: (bi, li, 0))
    pe_spec = pl.BlockSpec((1, l_tile, H), lambda bi, li: (0, li, 0))
    emb_spec = pl.BlockSpec((b_tile, 1, H), lambda bi, li: (bi, 0, 0))
    vec_spec = pl.BlockSpec((1, 1, H), lambda bi, li: (0, 0, 0))

    # ---- Pass 1: per-bi partial per-channel sum / sum-of-squares ----------
    partial_stats = pl.pallas_call(
        _stats_kernel,
        out_shape=jax.ShapeDtypeStruct((grid[0], 2, H), jnp.float32),
        grid=grid,
        in_specs=[x_spec, pe_spec, emb_spec],
        out_specs=pl.BlockSpec((1, 2, H), lambda bi, li: (bi, 0, 0)),
        compiler_params=pltpu.CompilerParams(
            dimension_semantics=("parallel", "arbitrary"),
            vmem_limit_bytes=vmem_limit),
        cost_estimate=pl.CostEstimate(
            flops=5 * n_elem, transcendentals=0,
            bytes_accessed=n_elem * itemsize + (L + B) * H * 4
            + grid[0] * 2 * H * 4),
    )(x, pe_c, emb_c)

    # ---- Tiny per-channel math in the wrapper (fused BN epilogue) ---------
    stats = jnp.sum(partial_stats, axis=0)               # (2, H)
    count = jnp.float32(B * L)
    mean_c = stats[0] / count
    var = jnp.maximum(stats[1] / count - mean_c * mean_c, 0.0)   # biased (train BN)
    scale = gamma.astype(jnp.float32) * jax.lax.rsqrt(var + BN_EPS)   # (H,)
    shift = beta.astype(jnp.float32) - mean_c * scale                  # (H,)
    pe_s = pe_c * scale                                   # (1, L, H)
    emb_s = emb_c * scale + shift                         # (B, 1, H)
    scale3 = scale.reshape(1, 1, H)

    # ---- Pass 2: normalize (embarrassingly parallel per tile) -------------
    out = pl.pallas_call(
        _norm_kernel,
        out_shape=jax.ShapeDtypeStruct((B, L, H), x.dtype),
        grid=grid,
        in_specs=[x_spec, pe_spec, emb_spec, vec_spec],
        out_specs=x_spec,
        compiler_params=pltpu.CompilerParams(
            dimension_semantics=("parallel", "parallel"),
            vmem_limit_bytes=vmem_limit),
        cost_estimate=pl.CostEstimate(
            flops=3 * n_elem, transcendentals=0,
            bytes_accessed=2 * n_elem * itemsize + (L + B + 1) * H * 4),
    )(x, pe_s, emb_s, scale3)
    return out


def vh_positional_encoding(x, g_id, pe_full, emb_table, gamma, beta,
                           *, force_two_pass=False, tile_override=None):
    """x: (B, L, H) f32/bf16; g_id: (B,) int32.  Returns (B, L, H) in x.dtype."""
    B, L, H = x.shape
    vmem_limit, tile_budget = _vmem_params()
    elem = x.dtype.itemsize

    # Single-kernel fast path: input + output + an f32 working copy resident.
    fused_bytes = B * L * H * (2 * elem + 8) + (B + L + 2) * H * 4
    if not force_two_pass and fused_bytes <= vmem_limit // 2:
        return _vh_fused(x, g_id, pe_full, emb_table, gamma, beta,
                         vmem_limit=vmem_limit)

    if tile_override is not None:
        b_tile, l_tile = tile_override
    else:
        b_tile, l_tile = _choose_tiles(B, L, H, elem, tile_budget)
    return _vh_two_pass(x, g_id, pe_full, emb_table, gamma, beta,
                        b_tile=b_tile, l_tile=l_tile, vmem_limit=vmem_limit)


# --------------------------------------------------------------------------
# Parameter construction / reference
# --------------------------------------------------------------------------
def make_sinusoidal_pe(max_length, hidden_dim):
    """Replicates VerticalEncoding.__init__ pe construction exactly."""
    pe = np.zeros((max_length, hidden_dim), dtype=np.float32)
    position = np.arange(0, max_length, dtype=np.float32)[:, None]          # (L,1)
    div_term = 1.0 / 10000.0 ** (
        np.arange(0, hidden_dim, 2, dtype=np.float32) * 2.0 / hidden_dim)   # (H/2,)
    pe[:, 0::2] = np.sin(position * div_term)
    pe[:, 1::2] = np.cos(position * div_term)
    return jnp.asarray(pe)


def reference_forward(x, g_id, pe_full, emb_table, gamma, beta):
    L = x.shape[1]
    y = x + pe_full[None, :L, :]
    y = y + emb_table[g_id][:, None, :]
    mean = y.mean(axis=(0, 1), keepdims=True)
    var = ((y - mean) ** 2).mean(axis=(0, 1), keepdims=True)
    return (y - mean) / jnp.sqrt(var + BN_EPS) * gamma[None, None, :] \
        + beta[None, None, :]


if __name__ == "__main__":
    MAX_LEN = 60
    key = jax.random.PRNGKey(0)
    (k_x, k_emb, k_gid, k_x2, k_emb2, k_gid2, k_g2, k_b2) = jax.random.split(key, 8)

    # ---- small shape -> single fused kernel (VMEM-resident fast path) -----
    B, L, H = 2, 8, 32
    x = jax.random.normal(k_x, (B, L, H), dtype=jnp.float32)
    g_id = jax.random.randint(k_gid, (B,), 0, GRID_NUNQ, dtype=jnp.int32)
    emb_table = jax.random.normal(k_emb, (GRID_NUNQ, H), dtype=jnp.float32)  # nn.Embedding ~ N(0,1)
    gamma = jnp.ones((H,), dtype=jnp.float32)                                # BatchNorm1d weight
    beta = jnp.zeros((H,), dtype=jnp.float32)                                # BatchNorm1d bias
    pe_full = make_sinusoidal_pe(MAX_LEN, H)

    out = jax.block_until_ready(
        vh_positional_encoding(x, g_id, pe_full, emb_table, gamma, beta))
    ref = reference_forward(x, g_id, pe_full, emb_table, gamma, beta)
    np.testing.assert_allclose(np.asarray(out), np.asarray(ref),
                               rtol=1e-5, atol=1e-5)

    # ---- forced two-pass path with a >1x>1 grid (stats accumulation) ------
    B2, L2, H2 = 4, 16, 128
    x2 = jax.random.normal(k_x2, (B2, L2, H2), dtype=jnp.float32)
    g_id2 = jax.random.randint(k_gid2, (B2,), 0, GRID_NUNQ, dtype=jnp.int32)
    emb_table2 = jax.random.normal(k_emb2, (GRID_NUNQ, H2), dtype=jnp.float32)
    gamma2 = 1.0 + 0.1 * jax.random.normal(k_g2, (H2,), dtype=jnp.float32)
    beta2 = 0.1 * jax.random.normal(k_b2, (H2,), dtype=jnp.float32)
    pe_full2 = make_sinusoidal_pe(MAX_LEN, H2)

    out2 = jax.block_until_ready(
        vh_positional_encoding(x2, g_id2, pe_full2, emb_table2, gamma2, beta2,
                               force_two_pass=True, tile_override=(2, 8)))
    ref2 = reference_forward(x2, g_id2, pe_full2, emb_table2, gamma2, beta2)
    np.testing.assert_allclose(np.asarray(out2), np.asarray(ref2),
                               rtol=1e-5, atol=1e-5)

    print("KERNEL_OK")
</pallas_src>

<mosaic_0001>
module attributes {stable_mosaic.version = 11 : i64} {
  func.func @_fused_kernel(%arg0: memref<2x8x32xf32, #tpu.memory_space<vmem>>, %arg1: memref<1x8x32xf32, #tpu.memory_space<vmem>>, %arg2: memref<2x1x32xf32, #tpu.memory_space<vmem>>, %arg3: memref<1x1x32xf32, #tpu.memory_space<vmem>>, %arg4: memref<1x1x32xf32, #tpu.memory_space<vmem>>, %arg5: memref<2x8x32xf32, #tpu.memory_space<vmem>>) attributes {dimension_semantics = [], scalar_prefetch = 0 : i64, scratch_operands = 0 : i64, tpu.core_type = #tpu.core_type<tc>} {
    %c0 = arith.constant 0 : index
    %c0_0 = arith.constant 0 : index
    %c0_1 = arith.constant 0 : index
    %0 = vector.load %arg0[%c0, %c0_0, %c0_1] : memref<2x8x32xf32, #tpu.memory_space<vmem>>, vector<2x8x32xf32>
    %c0_2 = arith.constant 0 : index
    %c0_3 = arith.constant 0 : index
    %c0_4 = arith.constant 0 : index
    %1 = vector.load %arg1[%c0_2, %c0_3, %c0_4] : memref<1x8x32xf32, #tpu.memory_space<vmem>>, vector<1x8x32xf32>
    %2 = vector.broadcast %1 : vector<1x8x32xf32> to vector<2x8x32xf32>
    %3 = arith.addf %0, %2 : vector<2x8x32xf32>
    %c0_5 = arith.constant 0 : index
    %c0_6 = arith.constant 0 : index
    %c0_7 = arith.constant 0 : index
    %4 = vector.load %arg2[%c0_5, %c0_6, %c0_7] : memref<2x1x32xf32, #tpu.memory_space<vmem>>, vector<2x1x32xf32>
    %5 = vector.broadcast %4 : vector<2x1x32xf32> to vector<2x8x32xf32>
    %6 = arith.addf %3, %5 : vector<2x8x32xf32>
    %cst = arith.constant dense<0.000000e+00> : vector<32xf32>
    %7 = vector.multi_reduction <add>, %6, %cst [0, 1] : vector<2x8x32xf32> to vector<32xf32>
    %8 = vector.shape_cast %7 : vector<32xf32> to vector<1x1x32xf32>
    %cst_8 = arith.constant 6.250000e-02 : f32
    %9 = vector.broadcast %cst_8 : f32 to vector<1x1x32xf32>
    %10 = arith.mulf %8, %9 : vector<1x1x32xf32>
    %11 = vector.broadcast %10 : vector<1x1x32xf32> to vector<2x8x32xf32>
    %12 = arith.subf %6, %11 : vector<2x8x32xf32>
    %13 = arith.mulf %12, %12 : vector<2x8x32xf32>
    %cst_9 = arith.constant dense<0.000000e+00> : vector<32xf32>
    %14 = vector.multi_reduction <add>, %13, %cst_9 [0, 1] : vector<2x8x32xf32> to vector<32xf32>
    %15 = vector.shape_cast %14 : vector<32xf32> to vector<1x1x32xf32>
    %cst_10 = arith.constant 6.250000e-02 : f32
    %16 = vector.broadcast %cst_10 : f32 to vector<1x1x32xf32>
    %17 = arith.mulf %15, %16 : vector<1x1x32xf32>
    %c0_11 = arith.constant 0 : index
    %c0_12 = arith.constant 0 : index
    %c0_13 = arith.constant 0 : index
    %18 = vector.load %arg3[%c0_11, %c0_12, %c0_13] : memref<1x1x32xf32, #tpu.memory_space<vmem>>, vector<1x1x32xf32>
    %cst_14 = arith.constant 9.99999974E-6 : f32
    %19 = vector.broadcast %cst_14 : f32 to vector<1x1x32xf32>
    %20 = arith.addf %17, %19 : vector<1x1x32xf32>
    %21 = math.rsqrt %20 : vector<1x1x32xf32>
    %22 = arith.mulf %18, %21 : vector<1x1x32xf32>
    %23 = vector.broadcast %22 : vector<1x1x32xf32> to vector<2x8x32xf32>
    %24 = arith.mulf %12, %23 : vector<2x8x32xf32>
    %c0_15 = arith.constant 0 : index
    %c0_16 = arith.constant 0 : index
    %c0_17 = arith.constant 0 : index
    %25 = vector.load %arg4[%c0_15, %c0_16, %c0_17] : memref<1x1x32xf32, #tpu.memory_space<vmem>>, vector<1x1x32xf32>
    %26 = vector.broadcast %25 : vector<1x1x32xf32> to vector<2x8x32xf32>
    %27 = arith.addf %24, %26 : vector<2x8x32xf32>
    %c0_18 = arith.constant 0 : index
    %c0_19 = arith.constant 0 : index
    %c0_20 = arith.constant 0 : index
    %28 = vector.load %arg5[%c0_18, %c0_19, %c0_20] : memref<2x8x32xf32, #tpu.memory_space<vmem>>, vector<2x8x32xf32>
    tpu.vector_store %arg5[%c0_18, %c0_19, %c0_20], %27 {strides = array<i32>} : memref<2x8x32xf32, #tpu.memory_space<vmem>>, vector<2x8x32xf32>,
    return
  }
}

</mosaic_0001>

<llo_original>
// kernel: _vh_fused.1
$region0: #{_vh_fused.1}
  #allocation0 [shape = 'u32[]', space=smem, size = 0x4, offset = 0x4, fixed_abs, tag = 'smem constant byte address 0x4 - core index']
  #allocation1 [shape = 'u32[144,128]{1,0:T(1,128)}', space=vmem, size = 0x12000, scoped, tag = 'internal scratch']
  %s0 = inlined_call_operand.vmem [shape: f32[2,8,32], index: 0, kind: input, shape index: {}]
  %s1 = inlined_call_operand.vmem [shape: f32[1,8,32], index: 1, kind: input, shape index: {}]
  %s2 = inlined_call_operand.vmem [shape: f32[2,1,32], index: 2, kind: input, shape index: {}]
  %s3 = inlined_call_operand.vmem [shape: f32[1,1,32], index: 3, kind: input, shape index: {}]
  %s4 = inlined_call_operand.vmem [shape: f32[1,1,32], index: 4, kind: input, shape index: {}]
  %s5 = inlined_call_operand.hbm [shape: f32[2,8,32], index: 5, kind: output, shape index: {}]
  %s6 = sld [smem:[#allocation0]]
  $region30: #{_vh_fused.1} parent=0
    _
  %s8 = ssub.s32 1, %s6
  %s9 = scalar_select 0, %s8, %s6
  $region1: #{_vh_fused.1} parent=0
    #allocation2 [shape = 'u8[8192]{0}', space=vmem, size = 0x2000, scoped, tag = 'output window, operand 0, single buffered']
    #allocation3 [shape = 's32[1]{0}', space=sflag, size = 0x4, scoped, tag = 'scoped memory for _vh_fused.1']
    %10 = vsyncpa [#allocation3], 0
    // Predicated region
    $region2: #{_vh_fused.1} parent=1 // pred_check
      _
    $region3: #{_vh_fused.1} parent=1 // pred_check_branch
      %12 = sbr.rel (0) target = $region5
    $region4: #{_vh_fused.1} parent=1 // pred_region
      _
    $region5: #{_vh_fused.1} parent=1 // pred_fallthru
      _
    // Predicated region
    $region6: #{_vh_fused.1} parent=1 // pred_check
      _
    $region7: #{_vh_fused.1} parent=1 // pred_check_branch
      %14 = sbr.rel (0) target = $region9
    $region8: #{_vh_fused.1} parent=1 // pred_region
      _
    $region9: #{_vh_fused.1} parent=1 // pred_fallthru
      _
    // Predicated region
    $region10: #{_vh_fused.1} parent=1 // pred_check
      _
    $region11: #{_vh_fused.1} parent=1 // pred_check_branch
      %16 = sbr.rel (0) target = $region13
    $region12: #{_vh_fused.1} parent=1 // pred_region
      _
    $region13: #{_vh_fused.1} parent=1 // pred_fallthru
      _
    // Predicated region
    $region14: #{_vh_fused.1} parent=1 // pred_check
      _
    $region15: #{_vh_fused.1} parent=1 // pred_check_branch
      %18 = sbr.rel (0) target = $region17
    $region16: #{_vh_fused.1} parent=1 // pred_region
      _
    $region17: #{_vh_fused.1} parent=1 // pred_fallthru
      _
    // Predicated region
    $region18: #{_vh_fused.1} parent=1 // pred_check
      _
    $region19: #{_vh_fused.1} parent=1 // pred_check_branch
      %20 = sbr.rel (0) target = $region21
    $region20: #{_vh_fused.1} parent=1 // pred_region
      _
    $region21: #{_vh_fused.1} parent=1 // pred_fallthru
      _
    %v21 = vld [vmem:[%s0] sm:$0xff]
    %v22 = vld [vmem:[%s0 + $0x8] sm:$0xff]
    %v23 = vld [vmem:[%s1] sm:$0xff]
    %v24 = vadd.f32 %v21, %v23
    %v25 = vadd.f32 %v22, %v23
    %v26 = vld [vmem:[%s2] sm:$0x1]
    %v27 = vld [vmem:[%s2 + $0x1] sm:$0x1]
    %v30 = vlaneseq
    %v31 = vshrl.u32 %v30, 7
    %v32 = vsub.s32 0, %v31
    %v33 = vrot.slane %v26, %v32
    %v34 = vlaneseq
    %v35 = vshrl.u32 %v34, 7
    %v36 = vsub.s32 0, %v35
    %v37 = vrot.slane %v27, %v36
    %v40 = vadd.f32 %v24, %v33
    %v41 = vadd.f32 %v25, %v37
    %vm42 = vcmask 261120
    %v43 = vsel %vm42, %v40, 0.0
    %v44 = vsel %vm42, %v41, 0.0
    %v45 = vadd.f32 %v43, %v44
    %v46 = vrot.slane %v45, 4
    %v47 = vadd.f32 %v45, %v46
    %v48 = vrot.slane %v47, 2
    %v49 = vadd.f32 %v47, %v48
    %v50 = vrot.slane %v49, 1
    %v51 = vadd.f32 %v49, %v50
    %v52 = vmul.f32 %v51, 0.0625
    %v53 = vsub.f32 %v40, %v52
    %v54 = vsub.f32 %v41, %v52
    %v55 = vmul.f32 %v53, %v53
    %v56 = vmul.f32 %v54, %v54
    %v57 = vsel %vm42, %v55, 0.0
    %v58 = vsel %vm42, %v56, 0.0
    %v59 = vadd.f32 %v57, %v58
    %v60 = vrot.slane %v59, 4
    %v61 = vadd.f32 %v59, %v60
    %v62 = vrot.slane %v61, 2
    %v63 = vadd.f32 %v61, %v62
    %v64 = vrot.slane %v63, 1
    %v65 = vadd.f32 %v63, %v64
    %v66 = vmul.f32 %v65, 0.0625
    %v67 = vld [vmem:[%s3] sm:$0x1]
    %v68 = vadd.f32 %v66, 1e-05
    %v69 = vrsqrt.pop %v68
    %v70 = vmul.f32 %v67, %v69
    %v72 = vlaneseq
    %v73 = vshrl.u32 %v72, 7
    %v74 = vsub.s32 0, %v73
    %v75 = vrot.slane %v70, %v74
    %v77 = vmul.f32 %v53, %v75
    %v78 = vmul.f32 %v54, %v75
    %v79 = vld [vmem:[%s4] sm:$0x1]
    %v81 = vlaneseq
    %v82 = vshrl.u32 %v81, 7
    %v83 = vsub.s32 0, %v82
    %v84 = vrot.slane %v79, %v83
    %v86 = vadd.f32 %v77, %v84
    %v87 = vadd.f32 %v78, %v84
    %88 = vst.msk [vmem:[#allocation2] sm:$0xff] %vm42, %v86
    %89 = vst.msk [vmem:[#allocation2 + $0x8] sm:$0xff] %vm42, %v87
    // Predicated region
    $region22: #{_vh_fused.1} parent=1 // pred_check
      _
    $region23: #{_vh_fused.1} parent=1 // pred_check_branch
      %91 = sbr.rel (0) target = $region25
    $region24: #{_vh_fused.1} parent=1 // pred_region
      %s93 = ssub.s32 256, 256
      %94 = vsyncadd [#allocation3], %s93
      %s95 = sshll.u32 [#allocation2], 4
      %s96 = int_to_ptr.vmem [resolvable:$true] %s95
      %101 = dma.vmem_to_hbm [thread:$0]  %s96, 256, %s5, [#allocation3], 128, 128, 8
    $region25: #{_vh_fused.1} parent=1 // pred_fallthru
      _
    // Predicated region
    $region26: #{_vh_fused.1} parent=1 // pred_check
      _
    $region27: #{_vh_fused.1} parent=1 // pred_check_branch
      %103 = sbr.rel (0) target = $region29
    $region28: #{_vh_fused.1} parent=1 // pred_region
      %104 = dma.done [#allocation3], 256
    $region29: #{_vh_fused.1} parent=1 // pred_fallthru
      _
    %105 = vsyncpa [#allocation3], 1

</llo_original>
